<compile_context>
chip_gen: v5e
topology: v5e:2x2
jax: 0.10.0
libtpu: 0.0.40
codegen_flags: <defaults>
</compile_context>

<pallas_src>
import jax
import jax.numpy as jnp
from jax.experimental import pallas as pl
from jax.experimental.pallas import tpu as pltpu

_LANES = 128
_SUBLANES = 8
_SMALL_N = 1024          # below this, plain jnp (fuses into surrounding graph)
_MAX_TILE_ROWS = 1024    # (1024,128) f32 tile = 512 KiB; 2x buffers x in+out ~ 2 MiB


# ----------------------------------------------------------------------------
# Kernel: elementwise budget loss on one (TR, 128) tile
#   s_ref (SMEM, f32[3]) : [coef, 1/flops_all, loss_mu]   (coef = loss_weight*wur)
#   x_ref (VMEM, f32[TR, 128]) : flops_expt values
#   o_ref (VMEM, f32[TR, 128]) : per-element losses
# ----------------------------------------------------------------------------
def _budget_loss_kernel(s_ref, x_ref, o_ref):
    coef = s_ref[0]
    inv_flops_all = s_ref[1]
    loss_mu = s_ref[2]
    d = x_ref[...] * inv_flops_all - loss_mu      # (flops_expt / flops_all - mu)
    o_ref[...] = coef * (d * d)                   # f32 epilogue (v5e-safe)


def _warm_up_coef(loss_weight, warm_up_rate, warm_up):
    # warm_up is a static Python bool -> resolve the branch at trace time.
    if warm_up:
        wur = jnp.minimum(jnp.float32(1.0), jnp.asarray(warm_up_rate, jnp.float32))
    else:
        wur = jnp.float32(1.0)
    return jnp.asarray(loss_weight, jnp.float32) * wur


# ----------------------------------------------------------------------------
# Wrapper: accepts scalar or arbitrarily-shaped flops_expt.
# ----------------------------------------------------------------------------
def budget_constraint_loss(flops_expt, warm_up_rate=1.0, *,
                           loss_weight, loss_mu, flops_all, warm_up):
    x = jnp.asarray(flops_expt, jnp.float32)
    orig_shape = x.shape
    n = int(x.size)

    coef = _warm_up_coef(loss_weight, warm_up_rate, warm_up)

    # --- Tiny-input fast path: no pad / no pallas_call dispatch overhead. ---
    if n <= _SMALL_N:
        return coef * (x / jnp.float32(flops_all) - jnp.float32(loss_mu)) ** 2

    # --- Pallas path (large inputs): lane-dense (rows, 128) slab. ---
    xf = x.reshape(-1)
    rows = int(pl.cdiv(n, _LANES))
    rows = int(pl.cdiv(rows, _SUBLANES)) * _SUBLANES          # multiple of 8
    pad = rows * _LANES - n
    if pad == 0:
        slab = xf.reshape(rows, _LANES)                       # aligned: no copy
    else:
        slab = jnp.pad(xf, (0, pad)).reshape(rows, _LANES)    # single fused pad

    tile_rows = min(_MAX_TILE_ROWS, rows)                     # multiple of 8
    grid = (int(pl.cdiv(rows, tile_rows)),)

    scalars = jnp.stack([
        coef,
        jnp.float32(1.0 / flops_all),
        jnp.float32(loss_mu),
    ])

    out = pl.pallas_call(
        _budget_loss_kernel,
        out_shape=jax.ShapeDtypeStruct((rows, _LANES), jnp.float32),
        grid=grid,
        in_specs=[
            pl.BlockSpec(memory_space=pltpu.MemorySpace.SMEM),            # scalars
            pl.BlockSpec((tile_rows, _LANES), lambda i: (i, 0)),          # flops tile
        ],
        out_specs=pl.BlockSpec((tile_rows, _LANES), lambda i: (i, 0)),
        compiler_params=pltpu.CompilerParams(
            dimension_semantics=("parallel",)),                # v7x: shard across 2 TCs
        cost_estimate=pl.CostEstimate(
            flops=4 * n, transcendentals=0, bytes_accessed=8 * n),
    )(scalars, slab)

    if pad == 0:
        return out.reshape(orig_shape)
    return out.reshape(-1)[:n].reshape(orig_shape)


# ----------------------------------------------------------------------------
# Pure-JAX reference (mirrors the PyTorch module exactly)
# ----------------------------------------------------------------------------
def budget_constraint_loss_ref(flops_expt, warm_up_rate=1.0, *,
                               loss_weight, loss_mu, flops_all, warm_up):
    wur = min(1.0, float(warm_up_rate)) if warm_up else 1.0
    x = jnp.asarray(flops_expt, jnp.float32)
    return loss_weight * wur * (x / flops_all - loss_mu) ** 2


def _close(a, b, rtol=1e-5):
    a = jnp.asarray(a); b = jnp.asarray(b)
    return bool(jnp.max(jnp.abs(a - b)) <= rtol * (1.0 + float(jnp.max(jnp.abs(b)))))


if __name__ == "__main__":
    key = jax.random.PRNGKey(0)

    # cfg.MODEL.BUDGET.*
    cfg = dict(loss_weight=0.5, loss_mu=0.6, flops_all=1.0e9, warm_up=True)

    # Case 1: scalar flops_expt (common case in dynamic-routing) -> jnp fast path.
    key, k1 = jax.random.split(key)
    flops_expt_scalar = jnp.abs(jax.random.normal(k1, (), jnp.float32)) * 5.0e8 + 1.0e8
    loss_s = jax.block_until_ready(
        budget_constraint_loss(flops_expt_scalar, warm_up_rate=0.3, **cfg))
    ref_s = budget_constraint_loss_ref(flops_expt_scalar, warm_up_rate=0.3, **cfg)
    assert loss_s.shape == () and bool(jnp.isfinite(loss_s))
    assert _close(loss_s, ref_s), (float(loss_s), float(ref_s))

    # Case 2: small batch, warm_up_rate > 1 (exercises the clamp) -> jnp fast path.
    key, k2 = jax.random.split(key)
    flops_expt_batch = jnp.abs(jax.random.normal(k2, (2, 8), jnp.float32)) * 8.0e8
    loss_b = jax.block_until_ready(
        budget_constraint_loss(flops_expt_batch, warm_up_rate=2.5, **cfg))
    ref_b = budget_constraint_loss_ref(flops_expt_batch, warm_up_rate=2.5, **cfg)
    assert loss_b.shape == (2, 8) and bool(jnp.all(jnp.isfinite(loss_b)))
    assert _close(loss_b, ref_b)

    # Case 3: aligned batched input (16, 128) -> Pallas path, no pad/unpad.
    key, k3 = jax.random.split(key)
    flops_aligned = jnp.abs(jax.random.normal(k3, (16, 128), jnp.float32)) * 8.0e8
    loss_a = jax.block_until_ready(
        budget_constraint_loss(flops_aligned, warm_up_rate=0.7, **cfg))
    ref_a = budget_constraint_loss_ref(flops_aligned, warm_up_rate=0.7, **cfg)
    assert loss_a.shape == (16, 128) and bool(jnp.all(jnp.isfinite(loss_a)))
    assert _close(loss_a, ref_a)

    # Case 4: non-aligned larger input (3, 700) -> Pallas path with pad + slice.
    key, k4 = jax.random.split(key)
    flops_ragged = jnp.abs(jax.random.normal(k4, (3, 700), jnp.float32)) * 6.0e8
    loss_r = jax.block_until_ready(
        budget_constraint_loss(flops_ragged, warm_up_rate=2.0, **cfg))
    ref_r = budget_constraint_loss_ref(flops_ragged, warm_up_rate=2.0, **cfg)
    assert loss_r.shape == (3, 700) and bool(jnp.all(jnp.isfinite(loss_r)))
    assert _close(loss_r, ref_r)

    # Case 5: warm_up disabled -> warm_up_rate forced to 1.0 regardless of argument.
    cfg_nowarm = dict(cfg, warm_up=False)
    loss_nw = jax.block_until_ready(
        budget_constraint_loss(flops_aligned, warm_up_rate=0.1, **cfg_nowarm))
    ref_nw = budget_constraint_loss_ref(flops_aligned, warm_up_rate=0.1, **cfg_nowarm)
    assert _close(loss_nw, ref_nw)

    print("KERNEL_OK")
</pallas_src>

<mosaic_0001>
module attributes {stable_mosaic.version = 11 : i64} {
  func.func @_budget_loss_kernel(%arg0: i32, %arg1: memref<3xf32, #tpu.memory_space<smem>>, %arg2: memref<16x128xf32, #tpu.memory_space<vmem>>, %arg3: memref<16x128xf32, #tpu.memory_space<vmem>>) attributes {dimension_semantics = [#tpu.dimension_semantics<parallel>], iteration_bounds = array<i64: 1>, scalar_prefetch = 0 : i64, scratch_operands = 0 : i64, tpu.core_type = #tpu.core_type<tc>, window_params = [{transform_indices = @transform_0, window_bounds = array<i64: 3>}, {transform_indices = @transform_1, window_bounds = array<i64: 16, 128>}, {transform_indices = @transform_2, window_bounds = array<i64: 16, 128>}]} {
    %c0 = arith.constant 0 : index
    %0 = memref.load %arg1[%c0] : memref<3xf32, #tpu.memory_space<smem>>
    %c1 = arith.constant 1 : index
    %1 = memref.load %arg1[%c1] : memref<3xf32, #tpu.memory_space<smem>>
    %c2 = arith.constant 2 : index
    %2 = memref.load %arg1[%c2] : memref<3xf32, #tpu.memory_space<smem>>
    %c0_0 = arith.constant 0 : index
    %c0_1 = arith.constant 0 : index
    %3 = vector.load %arg2[%c0_0, %c0_1] : memref<16x128xf32, #tpu.memory_space<vmem>>, vector<16x128xf32>
    %4 = vector.broadcast %1 : f32 to vector<16x128xf32>
    %5 = arith.mulf %3, %4 : vector<16x128xf32>
    %6 = vector.broadcast %2 : f32 to vector<16x128xf32>
    %7 = arith.subf %5, %6 : vector<16x128xf32>
    %8 = arith.mulf %7, %7 : vector<16x128xf32>
    %9 = vector.broadcast %0 : f32 to vector<16x128xf32>
    %10 = arith.mulf %9, %8 : vector<16x128xf32>
    %c0_2 = arith.constant 0 : index
    %c0_3 = arith.constant 0 : index
    %11 = vector.load %arg3[%c0_2, %c0_3] : memref<16x128xf32, #tpu.memory_space<vmem>>, vector<16x128xf32>
    tpu.vector_store %arg3[%c0_2, %c0_3], %10 {strides = array<i32>} : memref<16x128xf32, #tpu.memory_space<vmem>>, vector<16x128xf32>,
    return
  }
  func.func @transform_0(%arg0: i32) -> i32 {
    %c0_i32 = arith.constant 0 : i32
    %c0_i32_0 = arith.constant 0 : i32
    return %c0_i32 : i32
  }
  func.func @transform_1(%arg0: i32) -> (i32, i32) {
    %c0_i32 = arith.constant 0 : i32
    %c0_i32_0 = arith.constant 0 : i32
    return %arg0, %c0_i32 : i32, i32
  }
  func.func @transform_2(%arg0: i32) -> (i32, i32) {
    %c0_i32 = arith.constant 0 : i32
    %c0_i32_0 = arith.constant 0 : i32
    return %arg0, %c0_i32 : i32, i32
  }
}

</mosaic_0001>

<llo_original>
// kernel: tpu_custom_call.1
$region0: #{tpu_custom_call.1}
  #allocation0 [shape = 'u32[]', space=smem, size = 0x4, offset = 0x4, fixed_abs, tag = 'smem constant byte address 0x4 - core index']
  #allocation1 [shape = 'u32[72,128]{1,0:T(1,128)}', space=vmem, size = 0x9000, scoped, tag = 'internal scratch']
  %s0 = inlined_call_operand.hbm [shape: f32[3], index: 0, kind: input, shape index: {}]
  %s1 = inlined_call_operand.hbm [shape: f32[16,128], index: 1, kind: input, shape index: {}]
  %s2 = inlined_call_operand.hbm [shape: f32[16,128], index: 2, kind: output, shape index: {}]
  %s3 = sld [smem:[#allocation0]]
  $region26: #{tpu_custom_call.1} parent=0
    _
  %s5 = ssub.s32 1, %s3
  %s6 = scalar_select 0, %s5, %s3
  $region1: #{tpu_custom_call.1} parent=0
    #allocation2 [shape = 'u8[512]{0}', space=smem, size = 0x200, scoped, tag = 'input window, operand 0, single buffered']
    #allocation3 [shape = 's32[1]{0}', space=sflag, size = 0x4, scoped, tag = 'scoped memory for tpu_custom_call.1']
    #allocation4 [shape = 's32[1]{0}', space=sflag, size = 0x4, scoped, tag = 'scoped memory for tpu_custom_call.1']
    #allocation5 [shape = 's32[1]{0}', space=sflag, size = 0x4, scoped, tag = 'scoped memory for tpu_custom_call.1']
    #allocation6 [shape = 'u8[8192]{0}', space=vmem, size = 0x2000, scoped, tag = 'input window, operand 1, single buffered']
    #allocation7 [shape = 'u8[8192]{0}', space=vmem, size = 0x2000, scoped, tag = 'output window, operand 0, single buffered']
    %7 = vsyncpa [#allocation5], 0
    %8 = vsyncpa [#allocation3], 0
    %9 = vsyncpa [#allocation4], 0
    // Predicated region
    $region2: #{tpu_custom_call.1} parent=1 // pred_check
      _
    $region3: #{tpu_custom_call.1} parent=1 // pred_check_branch
      %11 = sbr.rel (0) target = $region5
    $region4: #{tpu_custom_call.1} parent=1 // pred_region
      %13 = vsyncadd [#allocation5], 0
      %s15 = sshll.u32 %s0, 4
      %s16 = int_to_ptr.hbm [resolvable:$true] %s15
      %18 = dma.hbm_to_smem %s16, 16, [#allocation2], [#allocation5]
    $region5: #{tpu_custom_call.1} parent=1 // pred_fallthru
      _
    // Predicated region
    $region6: #{tpu_custom_call.1} parent=1 // pred_check
      _
    $region7: #{tpu_custom_call.1} parent=1 // pred_check_branch
      %20 = sbr.rel (0) target = $region9
    $region8: #{tpu_custom_call.1} parent=1 // pred_region
      %22 = vsyncadd [#allocation3], 0
      %s23 = sshll.u32 %s1, 4
      %s24 = int_to_ptr.hbm [resolvable:$true] %s23
      %s25 = sshll.u32 [#allocation6], 4
      %s26 = int_to_ptr.vmem [resolvable:$true] %s25
      %31 = dma.hbm_to_vmem [thread:$0]  %s24, 256, %s26, [#allocation3], 128, 128, 8
    $region9: #{tpu_custom_call.1} parent=1 // pred_fallthru
      _
    // Predicated region
    $region10: #{tpu_custom_call.1} parent=1 // pred_check
      _
    $region11: #{tpu_custom_call.1} parent=1 // pred_check_branch
      %33 = sbr.rel (0) target = $region13
    $region12: #{tpu_custom_call.1} parent=1 // pred_region
      %35 = dma.done [#allocation5], 16
    $region13: #{tpu_custom_call.1} parent=1 // pred_fallthru
      _
    // Predicated region
    $region14: #{tpu_custom_call.1} parent=1 // pred_check
      _
    $region15: #{tpu_custom_call.1} parent=1 // pred_check_branch
      %37 = sbr.rel (0) target = $region17
    $region16: #{tpu_custom_call.1} parent=1 // pred_region
      %39 = dma.done [#allocation3], 256
    $region17: #{tpu_custom_call.1} parent=1 // pred_fallthru
      _
    %40 = sfence
    %s41 = sld [smem:[#allocation2]]
    %s42 = sld [smem:[#allocation2 + $0x1]]
    %s43 = sld [smem:[#allocation2 + $0x2]]
    %v44 = vld [vmem:[#allocation6] sm:$0xff]
    %v45 = vld [vmem:[#allocation6 + $0x8] sm:$0xff]
    %v46 = vstv %s42
    %v47 = vmul.f32 %v44, %v46
    %v48 = vmul.f32 %v45, %v46
    %v49 = vstv %s43
    %v50 = vsub.f32 %v47, %v49
    %v51 = vsub.f32 %v48, %v49
    %v52 = vmul.f32 %v50, %v50
    %v53 = vmul.f32 %v51, %v51
    %v54 = vstv %s41
    %v55 = vmul.f32 %v54, %v52
    %v56 = vmul.f32 %v54, %v53
    %57 = vst [vmem:[#allocation7] sm:$0xff] %v55
    %58 = vst [vmem:[#allocation7 + $0x8] sm:$0xff] %v56
    // Predicated region
    $region18: #{tpu_custom_call.1} parent=1 // pred_check
      _
    $region19: #{tpu_custom_call.1} parent=1 // pred_check_branch
      %60 = sbr.rel (0) target = $region21
    $region20: #{tpu_custom_call.1} parent=1 // pred_region
      %62 = vsyncadd [#allocation4], 0
      %s63 = sshll.u32 [#allocation7], 4
      %s64 = int_to_ptr.vmem [resolvable:$true] %s63
      %s65 = sshll.u32 %s2, 4
      %s66 = int_to_ptr.hbm [resolvable:$true] %s65
      %71 = dma.vmem_to_hbm [thread:$0]  %s64, 256, %s66, [#allocation4], 128, 128, 8
    $region21: #{tpu_custom_call.1} parent=1 // pred_fallthru
      _
    // Predicated region
    $region22: #{tpu_custom_call.1} parent=1 // pred_check
      _
    $region23: #{tpu_custom_call.1} parent=1 // pred_check_branch
      %73 = sbr.rel (0) target = $region25
    $region24: #{tpu_custom_call.1} parent=1 // pred_region
      %75 = dma.done [#allocation4], 256
    $region25: #{tpu_custom_call.1} parent=1 // pred_fallthru
      _
    %76 = vsyncpa [#allocation3], 1
    %77 = vsyncpa [#allocation4], 1
    %78 = vsyncpa [#allocation5], 1

</llo_original>
